<compile_context>
chip_gen: v5e
topology: v5e:2x2
jax: 0.10.0
libtpu: 0.0.40
codegen_flags: <defaults>
</compile_context>

<pallas_src>
import math
import functools

import jax
import jax.numpy as jnp
from jax.experimental import pallas as pl
from jax.experimental.pallas import tpu as pltpu


# ---------------------------------------------------------------------------
# Positional-encoding table (same math as the PyTorch __init__)
# ---------------------------------------------------------------------------
def make_positional_encoding(sequence_len: int, d_model: int) -> jnp.ndarray:
    t = jnp.arange(sequence_len, dtype=jnp.float32)[:, None]              # (S, 1)
    omega = jnp.exp(
        jnp.arange(0, d_model, 2, dtype=jnp.float32)
        * (-math.log(10000.0) / d_model)
    )                                                                     # (D/2,)
    pe = jnp.zeros((sequence_len, d_model), dtype=jnp.float32)
    pe = pe.at[:, 0::2].set(jnp.sin(t * omega))
    pe = pe.at[:, 1::2].set(jnp.cos(t * omega))
    return pe                                                             # (S, D)


# ---------------------------------------------------------------------------
# Kernels (operate on lane-dense (rows, lanes) tiles)
# ---------------------------------------------------------------------------
def _pe_add_kernel(x_ref, pe_ref, o_ref):
    # x_ref: (TB, TL), pe_ref: (1, TL) -> sublane broadcast, no [None] reshape.
    o_ref[...] = (x_ref[...] + pe_ref[...]).astype(o_ref.dtype)


def _pe_add_dropout_kernel(x_ref, pe_ref, bits_ref, o_ref, *, threshold, scale):
    # Integer-domain keep test: P(bits >= threshold) == 1 - rate.
    y = x_ref[...] + pe_ref[...]
    keep = bits_ref[...] >= jnp.uint32(threshold)
    o_ref[...] = jnp.where(keep, y * scale, 0).astype(o_ref.dtype)


# ---------------------------------------------------------------------------
# Tiling helpers
# ---------------------------------------------------------------------------
_TARGET_BLOCK_BYTES = 1 << 20   # ~1 MiB per input block; double-buffered total
                                # stays well under scoped VMEM on v5e/v6e/v7x.


def _pick_tile(extent: int, granule: int, max_tile: int) -> int:
    """Largest tile <= max_tile that is a multiple of `granule` and divides
    `extent`; falls back to the full extent (always a legal block shape)."""
    if extent <= max_tile:
        return extent
    if extent % granule != 0:
        return extent
    t = (max_tile // granule) * granule
    while t >= granule:
        if extent % t == 0:
            return t
        t -= granule
    return extent


# ---------------------------------------------------------------------------
# Wrapper
# ---------------------------------------------------------------------------
def positional_encoding_forward(
    x: jnp.ndarray,
    pos_enc: jnp.ndarray,
    *,
    dropout_rate: float = 0.0,
    training: bool = False,
    rng_key=None,
) -> jnp.ndarray:
    """x: (B, S, D); pos_enc: (S_full, D) with S_full >= S."""
    B, S, D = x.shape
    L = S * D

    pe = pos_enc[:S, :].astype(x.dtype)      # matches self._pos_enc[:, :S, :]
    x2 = x.reshape(B, L)                     # lane-dense layout
    pe2 = pe.reshape(1, L)

    itemsize = jnp.dtype(x.dtype).itemsize
    # Lane tile: multiple of 128 (or full L), up to 4096 lanes.
    tl = _pick_tile(L, 128, max_tile=max(128, min(L, 4096)))
    # Row tile: multiple of 8 (or full B), sized against the VMEM budget.
    rows_budget = max(8, _TARGET_BLOCK_BYTES // max(1, tl * itemsize))
    tb = _pick_tile(B, 8, max_tile=rows_budget)

    grid = (pl.cdiv(B, tb), pl.cdiv(L, tl))

    x_spec = pl.BlockSpec((tb, tl), lambda i, j: (i, j))
    pe_spec = pl.BlockSpec((1, tl), lambda i, j: (0, j))
    o_spec = pl.BlockSpec((tb, tl), lambda i, j: (i, j))

    compiler_params = pltpu.CompilerParams(
        dimension_semantics=("parallel", "parallel"),
        vmem_limit_bytes=32 * 1024 * 1024,
    )
    out_shape = jax.ShapeDtypeStruct((B, L), x.dtype)

    if not (training and dropout_rate > 0.0):
        # Eval mode (or rate==0): dropout is identity -> fused add only.
        cost = pl.CostEstimate(
            flops=B * L,
            transcendentals=0,
            bytes_accessed=(2 * B * L + L) * itemsize,
        )
        out2 = pl.pallas_call(
            _pe_add_kernel,
            out_shape=out_shape,
            grid=grid,
            in_specs=[x_spec, pe_spec],
            out_specs=o_spec,
            compiler_params=compiler_params,
            cost_estimate=cost,
        )(x2, pe2)
        return out2.reshape(B, S, D)

    # Training mode: inverted dropout with an integer-threshold keep test.
    if rng_key is None:
        rng_key = jax.random.PRNGKey(0)
    bits = jax.random.bits(rng_key, (B, L), dtype=jnp.uint32)
    threshold = min(int(round(float(dropout_rate) * (2.0 ** 32))), 2 ** 32 - 1)
    scale = 1.0 / (1.0 - float(dropout_rate))
    kernel = functools.partial(
        _pe_add_dropout_kernel, threshold=threshold, scale=scale
    )
    bits_spec = pl.BlockSpec((tb, tl), lambda i, j: (i, j))
    cost = pl.CostEstimate(
        flops=3 * B * L,
        transcendentals=0,
        bytes_accessed=(2 * B * L + L) * itemsize + B * L * 4,
    )
    out2 = pl.pallas_call(
        kernel,
        out_shape=out_shape,
        grid=grid,
        in_specs=[x_spec, pe_spec, bits_spec],
        out_specs=o_spec,
        compiler_params=compiler_params,
        cost_estimate=cost,
    )(x2, pe2, bits)
    return out2.reshape(B, S, D)


# ---------------------------------------------------------------------------
# Main
# ---------------------------------------------------------------------------
if __name__ == "__main__":
    B, S, D = 2, 8, 32
    sequence_len = 8
    dropout_rate = 0.1

    key = jax.random.PRNGKey(0)
    kx, kdrop = jax.random.split(key)
    x = jax.random.normal(kx, (B, S, D), dtype=jnp.float32)

    pos_enc = make_positional_encoding(sequence_len, D)

    # Eval-mode forward (dropout identity, like nn.Dropout in model.eval()).
    out = positional_encoding_forward(
        x, pos_enc, dropout_rate=dropout_rate, training=False
    )
    out = jax.block_until_ready(out)

    ref = x + pos_enc[None, :S, :]
    assert out.shape == x.shape and out.dtype == x.dtype
    assert jnp.allclose(out, ref, atol=1e-6, rtol=1e-6), "mismatch vs reference"

    # Training-mode forward (stochastic inverted dropout inside the kernel).
    out_train = positional_encoding_forward(
        x, pos_enc, dropout_rate=dropout_rate, training=True, rng_key=kdrop
    )
    out_train = jax.block_until_ready(out_train)
    assert out_train.shape == x.shape and out_train.dtype == x.dtype
    # Every output element is either dropped (0) or (x+pe) * 1/(1-rate).
    scaled = ref / (1.0 - dropout_rate)
    ok = jnp.isclose(out_train, scaled, atol=1e-5, rtol=1e-5) | (out_train == 0.0)
    assert bool(jnp.all(ok))
    # TODO(synk): PyTorch's dropout RNG stream cannot be reproduced bit-exactly;
    # the mask here comes from jax.random uint32 bits vs an integer threshold.

    print("KERNEL_OK")
</pallas_src>

<mosaic_0001>
module attributes {stable_mosaic.version = 11 : i64} {
  func.func @_pe_add_kernel(%arg0: i32, %arg1: i32, %arg2: memref<2x256xf32, #tpu.memory_space<vmem>>, %arg3: memref<1x256xf32, #tpu.memory_space<vmem>>, %arg4: memref<2x256xf32, #tpu.memory_space<vmem>>) attributes {dimension_semantics = [#tpu.dimension_semantics<parallel>, #tpu.dimension_semantics<parallel>], iteration_bounds = array<i64: 1, 1>, scalar_prefetch = 0 : i64, scratch_operands = 0 : i64, tpu.core_type = #tpu.core_type<tc>, window_params = [{transform_indices = @transform_0, window_bounds = array<i64: 2, 256>}, {transform_indices = @transform_1, window_bounds = array<i64: 1, 256>}, {transform_indices = @transform_2, window_bounds = array<i64: 2, 256>}]} {
    %c0 = arith.constant 0 : index
    %c0_0 = arith.constant 0 : index
    %0 = vector.load %arg2[%c0, %c0_0] : memref<2x256xf32, #tpu.memory_space<vmem>>, vector<2x256xf32>
    %c0_1 = arith.constant 0 : index
    %c0_2 = arith.constant 0 : index
    %1 = vector.load %arg3[%c0_1, %c0_2] : memref<1x256xf32, #tpu.memory_space<vmem>>, vector<1x256xf32>
    %2 = vector.broadcast %1 : vector<1x256xf32> to vector<2x256xf32>
    %3 = arith.addf %0, %2 : vector<2x256xf32>
    %c0_3 = arith.constant 0 : index
    %c0_4 = arith.constant 0 : index
    %4 = vector.load %arg4[%c0_3, %c0_4] : memref<2x256xf32, #tpu.memory_space<vmem>>, vector<2x256xf32>
    tpu.vector_store %arg4[%c0_3, %c0_4], %3 {strides = array<i32>} : memref<2x256xf32, #tpu.memory_space<vmem>>, vector<2x256xf32>,
    return
  }
  func.func @transform_0(%arg0: i32, %arg1: i32) -> (i32, i32) {
    %c0_i32 = arith.constant 0 : i32
    return %arg0, %arg1 : i32, i32
  }
  func.func @transform_1(%arg0: i32, %arg1: i32) -> (i32, i32) {
    %c0_i32 = arith.constant 0 : i32
    %c0_i32_0 = arith.constant 0 : i32
    return %c0_i32, %arg1 : i32, i32
  }
  func.func @transform_2(%arg0: i32, %arg1: i32) -> (i32, i32) {
    %c0_i32 = arith.constant 0 : i32
    return %arg0, %arg1 : i32, i32
  }
}

</mosaic_0001>

<llo_original>
// kernel: tpu_custom_call.1
$region0: #{tpu_custom_call.1}
  #allocation0 [shape = 'u32[]', space=smem, size = 0x4, offset = 0x4, fixed_abs, tag = 'smem constant byte address 0x4 - core index']
  #allocation1 [shape = 'u32[72,128]{1,0:T(1,128)}', space=vmem, size = 0x9000, scoped, tag = 'internal scratch']
  %s0 = inlined_call_operand.hbm [shape: f32[2,256], index: 0, kind: input, shape index: {}]
  %s1 = inlined_call_operand.hbm [shape: f32[1,256], index: 1, kind: input, shape index: {}]
  %s2 = inlined_call_operand.hbm [shape: f32[2,256], index: 2, kind: output, shape index: {}]
  %s3 = sld [smem:[#allocation0]]
  $region26: #{tpu_custom_call.1} parent=0
    _
  %s5 = ssub.s32 1, %s3
  %s6 = scalar_select 0, %s5, %s3
  $region1: #{tpu_custom_call.1} parent=0
    #allocation2 [shape = 'u8[2048]{0}', space=vmem, size = 0x800, scoped, tag = 'input window, operand 0, single buffered']
    #allocation3 [shape = 's32[1]{0}', space=sflag, size = 0x4, scoped, tag = 'scoped memory for tpu_custom_call.1']
    #allocation4 [shape = 's32[1]{0}', space=sflag, size = 0x4, scoped, tag = 'scoped memory for tpu_custom_call.1']
    #allocation5 [shape = 'u8[1024]{0}', space=vmem, size = 0x400, scoped, tag = 'input window, operand 1, single buffered']
    #allocation6 [shape = 's32[1]{0}', space=sflag, size = 0x4, scoped, tag = 'scoped memory for tpu_custom_call.1']
    #allocation7 [shape = 'u8[2048]{0}', space=vmem, size = 0x800, scoped, tag = 'output window, operand 0, single buffered']
    %7 = vsyncpa [#allocation3], 0
    %8 = vsyncpa [#allocation6], 0
    %9 = vsyncpa [#allocation4], 0
    // Predicated region
    $region2: #{tpu_custom_call.1} parent=1 // pred_check
      _
    $region3: #{tpu_custom_call.1} parent=1 // pred_check_branch
      %11 = sbr.rel (0) target = $region5
    $region4: #{tpu_custom_call.1} parent=1 // pred_region
      %13 = vsyncadd [#allocation3], 0
      %s15 = sshll.u32 %s0, 4
      %s16 = int_to_ptr.hbm [resolvable:$true] %s15
      %s17 = sshll.u32 [#allocation2], 4
      %s18 = int_to_ptr.vmem [resolvable:$true] %s17
      %20 = dma.hbm_to_vmem [thread:$0]  %s16, 64, %s18, [#allocation3]
    $region5: #{tpu_custom_call.1} parent=1 // pred_fallthru
      _
    // Predicated region
    $region6: #{tpu_custom_call.1} parent=1 // pred_check
      _
    $region7: #{tpu_custom_call.1} parent=1 // pred_check_branch
      %22 = sbr.rel (0) target = $region9
    $region8: #{tpu_custom_call.1} parent=1 // pred_region
      %24 = vsyncadd [#allocation6], 0
      %s26 = sshll.u32 %s1, 4
      %s27 = int_to_ptr.hbm [resolvable:$true] %s26
      %s28 = sshll.u32 [#allocation5], 4
      %s29 = int_to_ptr.vmem [resolvable:$true] %s28
      %31 = dma.hbm_to_vmem [thread:$0]  %s27, 32, %s29, [#allocation6]
    $region9: #{tpu_custom_call.1} parent=1 // pred_fallthru
      _
    // Predicated region
    $region10: #{tpu_custom_call.1} parent=1 // pred_check
      _
    $region11: #{tpu_custom_call.1} parent=1 // pred_check_branch
      %33 = sbr.rel (0) target = $region13
    $region12: #{tpu_custom_call.1} parent=1 // pred_region
      %35 = dma.done [#allocation3], 64
    $region13: #{tpu_custom_call.1} parent=1 // pred_fallthru
      _
    // Predicated region
    $region14: #{tpu_custom_call.1} parent=1 // pred_check
      _
    $region15: #{tpu_custom_call.1} parent=1 // pred_check_branch
      %37 = sbr.rel (0) target = $region17
    $region16: #{tpu_custom_call.1} parent=1 // pred_region
      %39 = dma.done [#allocation6], 32
    $region17: #{tpu_custom_call.1} parent=1 // pred_fallthru
      _
    %v40 = vld [vmem:[#allocation2] sm:$0xf]
    %v41 = vld [vmem:[#allocation5] sm:$0x3]
    %v43 = vperm.slane %v41, 0
    %v44 = vperm.slane %v41, 1
    %v45 = vrot.slane %v44, 6
    %vm46 = vcmask 1041408
    %v47 = vsel %vm46, %v43, %v45
    %v49 = vadd.f32 %v40, %v47
    %50 = vst [vmem:[#allocation7] sm:$0xf] %v49
    // Predicated region
    $region18: #{tpu_custom_call.1} parent=1 // pred_check
      _
    $region19: #{tpu_custom_call.1} parent=1 // pred_check_branch
      %52 = sbr.rel (0) target = $region21
    $region20: #{tpu_custom_call.1} parent=1 // pred_region
      %54 = vsyncadd [#allocation4], 0
      %s56 = sshll.u32 [#allocation7], 4
      %s57 = int_to_ptr.vmem [resolvable:$true] %s56
      %s58 = sshll.u32 %s2, 4
      %s59 = int_to_ptr.hbm [resolvable:$true] %s58
      %61 = dma.vmem_to_hbm [thread:$0]  %s57, 64, %s59, [#allocation4]
    $region21: #{tpu_custom_call.1} parent=1 // pred_fallthru
      _
    // Predicated region
    $region22: #{tpu_custom_call.1} parent=1 // pred_check
      _
    $region23: #{tpu_custom_call.1} parent=1 // pred_check_branch
      %63 = sbr.rel (0) target = $region25
    $region24: #{tpu_custom_call.1} parent=1 // pred_region
      %65 = dma.done [#allocation4], 64
    $region25: #{tpu_custom_call.1} parent=1 // pred_fallthru
      _
    %66 = vsyncpa [#allocation3], 1
    %67 = vsyncpa [#allocation6], 1
    %68 = vsyncpa [#allocation4], 1

</llo_original>
